<compile_context>
chip_gen: v7x
topology: tpu7x:2x2x1
jax: 0.10.0
libtpu: 0.0.40
codegen_flags: <defaults>
</compile_context>

<pallas_src>
import functools
import math

import jax
import jax.numpy as jnp
from jax.experimental import pallas as pl
from jax.experimental.pallas import tpu as pltpu

_LANE = 128
_SUBLANE = 8
_MAX_BLOCK_ROWS = 4096     # (4096, 128) f32 = 2 MiB per pipeline buffer
_NUM_CORES = 2             # leading "parallel" grid axis (megacore split)
_FALLBACK_ELEMS = 1 << 16  # below this, plain XLA reduction wins


def _round_up(a, b):
    return ((a + b - 1) // b) * b


def _min_sublanes(dtype):
    """Minimum sublane multiple for this dtype's (sublane, 128) tile."""
    bits = jnp.dtype(dtype).itemsize * 8
    return _SUBLANE * max(1, 32 // bits)


def _prep(x):
    """Flatten to a lane-dense (rows, 128) slab with minimal copying.

    Tensors whose size is a multiple of 128 are reshaped for free; ragged /
    tiny tensors are padded with 1.0 (log(1) == 0, so the padding is exact)
    up to a full lane row and at least one minimum tile for the dtype.
    """
    sub = _min_sublanes(x.dtype)
    flat = jnp.ravel(x)
    n = flat.shape[0]
    padded_n = max(_round_up(n, _LANE), sub * _LANE)
    if padded_n != n:
        flat = jnp.pad(flat, (0, padded_n - n), constant_values=1)
    return flat.reshape(-1, _LANE), sub


def _block_rows(rows, sub, max_rows):
    """Largest row-block <= max_rows that is a multiple of the dtype's
    min-sublane count (rows >= sub is guaranteed by _prep)."""
    return max((min(max_rows, rows) // sub) * sub, sub)


def _acc_rows(block_rows):
    """Widest accumulator (multiple of 8, <= 64 rows) dividing the block."""
    for r in (64, 32, 16, 8):
        if block_rows % r == 0:
            return r
    return _SUBLANE


def _accum_block(ref, acc_ref, block_rows, acc_rows, *, mask_start=None,
                 valid_rows=None):
    """acc += row-group-folded sum(log(block)).  Pure VPU work.

    NOTE: for a partial last block the Pallas-padded region of `ref` holds
    arbitrary data whose log may be NaN/-inf; the jnp.where mask must stay
    *after* the log and *before* the accumulate (the select discards it).
    """
    logs = jnp.log(ref[...].astype(jnp.float32))
    if mask_start is not None:
        row_ids = (jax.lax.broadcasted_iota(jnp.int32, (block_rows, _LANE), 0)
                   + mask_start)
        logs = jnp.where(row_ids < valid_rows, logs, 0.0)
    acc_ref[...] += jnp.sum(
        logs.reshape(block_rows // acc_rows, acc_rows, _LANE), axis=0)


def _fused_sum_log_kernel(y_ref, z_ref, oy_ref, oz_ref, acc_y, acc_z, *,
                          gy, gz, gy_pc, gz_pc, rows_y, rows_z,
                          bry, brz, acc_ry, acc_rz):
    c = pl.program_id(0)          # core index (parallel axis)
    j = pl.program_id(1)          # per-core step (arbitrary axis)

    @pl.when(j == 0)
    def _init():
        acc_y[...] = jnp.zeros_like(acc_y)
        acc_z[...] = jnp.zeros_like(acc_z)

    # Logical (unclamped) block indices owned by this core at this step.
    yb = c * gy_pc + j
    zb = c * gz_pc + (j - gy_pc)
    y_active = jnp.logical_and(j < gy_pc, yb < gy)
    z_active = jnp.logical_and(j >= gy_pc, zb < gz)

    # --- y phase: per-core steps [0, gy_pc) ----------------------------------
    if rows_y % bry:   # static: a ragged last block exists
        @pl.when(jnp.logical_and(y_active, yb < gy - 1))
        def _y_full():
            _accum_block(y_ref, acc_y, bry, acc_ry)

        @pl.when(jnp.logical_and(y_active, yb == gy - 1))
        def _y_tail():
            _accum_block(y_ref, acc_y, bry, acc_ry,
                         mask_start=(gy - 1) * bry, valid_rows=rows_y)
    else:
        @pl.when(y_active)
        def _y_full():
            _accum_block(y_ref, acc_y, bry, acc_ry)

    # --- z phase: per-core steps [gy_pc, gy_pc + gz_pc) ----------------------
    if rows_z % brz:
        @pl.when(jnp.logical_and(z_active, zb < gz - 1))
        def _z_full():
            _accum_block(z_ref, acc_z, brz, acc_rz)

        @pl.when(jnp.logical_and(z_active, zb == gz - 1))
        def _z_tail():
            _accum_block(z_ref, acc_z, brz, acc_rz,
                         mask_start=(gz - 1) * brz, valid_rows=rows_z)
    else:
        @pl.when(z_active)
        def _z_full():
            _accum_block(z_ref, acc_z, brz, acc_rz)

    # --- per-core writeback: lane-dense partial slabs; the final cross-core /
    # cross-lane reduce happens in the (tiny) XLA epilogue. ------------------
    @pl.when(j == pl.num_programs(1) - 1)
    def _finalize():
        oy_ref[...] = acc_y[...].reshape(1, acc_ry, _LANE)
        oz_ref[...] = acc_z[...].reshape(1, acc_rz, _LANE)


def _fused_sum_log(y, z, *, max_block_rows=_MAX_BLOCK_ROWS):
    """Returns (sum(log(y)), sum(log(z))) computed in one fused Pallas kernel."""
    y2d, sub_y = _prep(y)
    z2d, sub_z = _prep(z)
    rows_y, rows_z = y2d.shape[0], z2d.shape[0]
    bry = _block_rows(rows_y, sub_y, max_block_rows)
    brz = _block_rows(rows_z, sub_z, max_block_rows)
    gy, gz = pl.cdiv(rows_y, bry), pl.cdiv(rows_z, brz)
    # Per-core block counts; grid = (cores, per-core y-blocks + z-blocks).
    gy_pc, gz_pc = pl.cdiv(gy, _NUM_CORES), pl.cdiv(gz, _NUM_CORES)
    steps = gy_pc + gz_pc
    acc_ry, acc_rz = _acc_rows(bry), _acc_rows(brz)

    kernel = functools.partial(
        _fused_sum_log_kernel,
        gy=gy, gz=gz, gy_pc=gy_pc, gz_pc=gz_pc,
        rows_y=rows_y, rows_z=rows_z, bry=bry, brz=brz,
        acc_ry=acc_ry, acc_rz=acc_rz)

    def y_map(c, j):
        # Pin to this core's last y block during the z phase; clamp into range
        # for cores whose y share is short (those steps are skipped in-kernel).
        jj = jnp.minimum(j, gy_pc - 1)
        return (jnp.minimum(c * gy_pc + jj, gy - 1), 0)

    def z_map(c, j):
        # Pin to this core's first z block during the y phase.
        jj = jnp.maximum(j - gy_pc, 0)
        return (jnp.minimum(c * gz_pc + jj, gz - 1), 0)

    oy, oz = pl.pallas_call(
        kernel,
        out_shape=(
            jax.ShapeDtypeStruct((_NUM_CORES, acc_ry, _LANE), jnp.float32),
            jax.ShapeDtypeStruct((_NUM_CORES, acc_rz, _LANE), jnp.float32),
        ),
        grid_spec=pltpu.PrefetchScalarGridSpec(
            num_scalar_prefetch=0,
            grid=(_NUM_CORES, steps),
            in_specs=[
                pl.BlockSpec((bry, _LANE), y_map),
                pl.BlockSpec((brz, _LANE), z_map),
            ],
            out_specs=[
                pl.BlockSpec((1, acc_ry, _LANE), lambda c, j: (c, 0, 0)),
                pl.BlockSpec((1, acc_rz, _LANE), lambda c, j: (c, 0, 0)),
            ],
            scratch_shapes=[
                pltpu.VMEM((acc_ry, _LANE), jnp.float32),   # acc_y
                pltpu.VMEM((acc_rz, _LANE), jnp.float32),   # acc_z
            ],
        ),
        compiler_params=pltpu.CompilerParams(
            dimension_semantics=("parallel", "arbitrary"),
        ),
    )(y2d, z2d)
    # Tiny epilogue: cross-core + cross-lane reduction, fused by XLA with the
    # bpp scaling below.
    return jnp.sum(oy), jnp.sum(oz)


def em_loss(stpm_out, target, *, min_pallas_elements=_FALLBACK_ELEMS,
            max_block_rows=_MAX_BLOCK_ROWS):
    """JAX/Pallas equivalent of EMLoss.forward."""
    y = stpm_out["likelihoods"]["y"]
    z = stpm_out["likelihoods"]["z"]
    N, _, H, W = target.shape
    num_pixels = N * H * W
    scale = 1.0 / (-math.log(2.0) * num_pixels)

    if y.size + z.size < min_pallas_elements:
        # Launch + padding overhead dominates for tiny inputs; let XLA fuse it.
        sum_log_y = jnp.sum(jnp.log(y.astype(jnp.float32)))
        sum_log_z = jnp.sum(jnp.log(z.astype(jnp.float32)))
    else:
        sum_log_y, sum_log_z = _fused_sum_log(y, z,
                                              max_block_rows=max_block_rows)

    y_bpp = sum_log_y * scale
    z_bpp = sum_log_z * scale
    return {"y_bpp_loss": y_bpp, "z_bpp_loss": z_bpp, "loss": y_bpp + z_bpp}


if __name__ == "__main__":
    key = jax.random.PRNGKey(0)
    k_y, k_z = jax.random.split(key)

    # Small shapes consistent with a compression entropy model: target image
    # (N, C, H, W); likelihoods y/z are downsampled latents (NCHW).
    # y (2*4*12*12 = 1152 elems -> 9 rows of 128) exercises the 2-core split,
    # the multi-block path and the masked ragged tail; z is bf16 to exercise
    # native sub-32-bit streaming (16-sublane min tile) and the log(1)=0 pad.
    target = jnp.zeros((2, 3, 16, 16), dtype=jnp.float32)
    lik_y = jax.random.uniform(k_y, (2, 4, 12, 12), dtype=jnp.float32,
                               minval=0.05, maxval=1.0)
    lik_z = jax.random.uniform(k_z, (2, 4, 2, 2), dtype=jnp.float32,
                               minval=0.05, maxval=1.0).astype(jnp.bfloat16)

    stpm_out = {"likelihoods": {"y": lik_y, "z": lik_z}}

    # Force the Pallas path (these test inputs are below the fallback size).
    out = em_loss(stpm_out, target, min_pallas_elements=0)
    out = jax.tree_util.tree_map(jax.block_until_ready, out)

    # Cross-check against a plain-JAX reference of the PyTorch semantics.
    num_pixels = target.shape[0] * target.shape[2] * target.shape[3]
    ref_y = jnp.sum(jnp.log(lik_y.astype(jnp.float32))) / (
        -math.log(2.0) * num_pixels)
    ref_z = jnp.sum(jnp.log(lik_z.astype(jnp.float32))) / (
        -math.log(2.0) * num_pixels)
    assert jnp.allclose(out["y_bpp_loss"], ref_y, rtol=1e-5, atol=1e-6)
    assert jnp.allclose(out["z_bpp_loss"], ref_z, rtol=1e-5, atol=1e-6)
    assert jnp.allclose(out["loss"], ref_y + ref_z, rtol=1e-5, atol=1e-6)

    # Default call takes the small-input XLA fallback path; must agree.
    out_fb = jax.tree_util.tree_map(jax.block_until_ready,
                                    em_loss(stpm_out, target))
    assert jnp.allclose(out_fb["loss"], out["loss"], rtol=1e-5, atol=1e-6)

    print("KERNEL_OK")
</pallas_src>

<mosaic_0001>
module attributes {stable_mosaic.version = 11 : i64} {
  func.func @_fused_sum_log_kernel(%arg0: i32, %arg1: i32, %arg2: memref<8x128xf32, #tpu.memory_space<vmem>>, %arg3: memref<16x128xbf16, #tpu.memory_space<vmem>>, %arg4: memref<1x8x128xf32, #tpu.memory_space<vmem>>, %arg5: memref<1x16x128xf32, #tpu.memory_space<vmem>>, %arg6: memref<8x128xf32, #tpu.memory_space<vmem>>, %arg7: memref<16x128xf32, #tpu.memory_space<vmem>>) attributes {dimension_semantics = [#tpu.dimension_semantics<parallel>, #tpu.dimension_semantics<arbitrary>], iteration_bounds = array<i64: 2, 2>, scalar_prefetch = 0 : i64, scratch_operands = 2 : i64, tpu.core_type = #tpu.core_type<tc>, window_params = [{transform_indices = @transform_0, window_bounds = array<i64: 8, 128>}, {transform_indices = @transform_1, window_bounds = array<i64: 16, 128>}, {transform_indices = @transform_2, window_bounds = array<i64: 1, 8, 128>}, {transform_indices = @transform_3, window_bounds = array<i64: 1, 16, 128>}]} {
    %c0_i32 = arith.constant 0 : i32
    %0 = arith.cmpi eq, %arg1, %c0_i32 : i32
    %1 = arith.extui %0 : i1 to i32
    %c0_i32_0 = arith.constant 0 : i32
    %2 = arith.cmpi ne, %1, %c0_i32_0 : i32
    scf.if %2 {
      %cst = arith.constant 0.000000e+00 : f32
      %27 = vector.broadcast %cst : f32 to vector<8x128xf32>
      %c0 = arith.constant 0 : index
      %c0_13 = arith.constant 0 : index
      %28 = vector.load %arg6[%c0, %c0_13] : memref<8x128xf32, #tpu.memory_space<vmem>>, vector<8x128xf32>
      tpu.vector_store %arg6[%c0, %c0_13], %27 {strides = array<i32>} : memref<8x128xf32, #tpu.memory_space<vmem>>, vector<8x128xf32>,
      %cst_14 = arith.constant 0.000000e+00 : f32
      %29 = vector.broadcast %cst_14 : f32 to vector<16x128xf32>
      %c0_15 = arith.constant 0 : index
      %c0_16 = arith.constant 0 : index
      %30 = vector.load %arg7[%c0_15, %c0_16] : memref<16x128xf32, #tpu.memory_space<vmem>>, vector<16x128xf32>
      tpu.vector_store %arg7[%c0_15, %c0_16], %29 {strides = array<i32>} : memref<16x128xf32, #tpu.memory_space<vmem>>, vector<16x128xf32>,
    } else {
    }
    %c1_i32 = arith.constant 1 : i32
    %3 = arith.muli %arg0, %c1_i32 : i32
    %4 = arith.addi %3, %arg1 : i32
    %c1_i32_1 = arith.constant 1 : i32
    %5 = arith.muli %arg0, %c1_i32_1 : i32
    %c1_i32_2 = arith.constant 1 : i32
    %6 = arith.subi %arg1, %c1_i32_2 : i32
    %7 = arith.addi %5, %6 : i32
    %c1_i32_3 = arith.constant 1 : i32
    %8 = arith.cmpi slt, %arg1, %c1_i32_3 : i32
    %c2_i32 = arith.constant 2 : i32
    %9 = arith.cmpi slt, %4, %c2_i32 : i32
    %10 = arith.andi %8, %9 : i1
    %c1_i32_4 = arith.constant 1 : i32
    %11 = arith.cmpi sge, %arg1, %c1_i32_4 : i32
    %c1_i32_5 = arith.constant 1 : i32
    %12 = arith.cmpi slt, %7, %c1_i32_5 : i32
    %13 = arith.andi %11, %12 : i1
    %c1_i32_6 = arith.constant 1 : i32
    %14 = arith.cmpi slt, %4, %c1_i32_6 : i32
    %15 = arith.andi %10, %14 : i1
    %16 = arith.extui %15 : i1 to i32
    %c0_i32_7 = arith.constant 0 : i32
    %17 = arith.cmpi ne, %16, %c0_i32_7 : i32
    scf.if %17 {
      %c0 = arith.constant 0 : index
      %c0_13 = arith.constant 0 : index
      %27 = vector.load %arg2[%c0, %c0_13] : memref<8x128xf32, #tpu.memory_space<vmem>>, vector<8x128xf32>
      %28 = math.log %27 : vector<8x128xf32>
      %c0_14 = arith.constant 0 : index
      %c0_15 = arith.constant 0 : index
      %29 = vector.load %arg6[%c0_14, %c0_15] : memref<8x128xf32, #tpu.memory_space<vmem>>, vector<8x128xf32>
      %30 = vector.shape_cast %28 : vector<8x128xf32> to vector<1x8x128xf32>
      %cst = arith.constant dense<0.000000e+00> : vector<8x128xf32>
      %31 = vector.multi_reduction <add>, %30, %cst [0] : vector<1x8x128xf32> to vector<8x128xf32>
      %32 = arith.addf %29, %31 : vector<8x128xf32>
      %c0_16 = arith.constant 0 : index
      %c0_17 = arith.constant 0 : index
      %33 = vector.load %arg6[%c0_16, %c0_17] : memref<8x128xf32, #tpu.memory_space<vmem>>, vector<8x128xf32>
      tpu.vector_store %arg6[%c0_16, %c0_17], %32 {strides = array<i32>} : memref<8x128xf32, #tpu.memory_space<vmem>>, vector<8x128xf32>,
    } else {
    }
    %c1_i32_8 = arith.constant 1 : i32
    %18 = arith.cmpi eq, %4, %c1_i32_8 : i32
    %19 = arith.andi %10, %18 : i1
    %20 = arith.extui %19 : i1 to i32
    %c0_i32_9 = arith.constant 0 : i32
    %21 = arith.cmpi ne, %20, %c0_i32_9 : i32
    scf.if %21 {
      %c0 = arith.constant 0 : index
      %c0_13 = arith.constant 0 : index
      %27 = vector.load %arg2[%c0, %c0_13] : memref<8x128xf32, #tpu.memory_space<vmem>>, vector<8x128xf32>
      %28 = math.log %27 : vector<8x128xf32>
      %29 = tpu.iota {dimensions = array<i32: 0>} : vector<8x128xi32>
      %c8_i32 = arith.constant 8 : i32
      %30 = vector.broadcast %c8_i32 : i32 to vector<8x128xi32>
      %31 = arith.addi %29, %30 : vector<8x128xi32>
      %c9_i32 = arith.constant 9 : i32
      %32 = vector.broadcast %c9_i32 : i32 to vector<8x128xi32>
      %33 = arith.cmpi slt, %31, %32 : vector<8x128xi32>
      %cst = arith.constant 0.000000e+00 : f32
      %34 = vector.broadcast %cst : f32 to vector<8x128xf32>
      %35 = arith.select %33, %28, %34 : vector<8x128xi1>, vector<8x128xf32>
      %c0_14 = arith.constant 0 : index
      %c0_15 = arith.constant 0 : index
      %36 = vector.load %arg6[%c0_14, %c0_15] : memref<8x128xf32, #tpu.memory_space<vmem>>, vector<8x128xf32>
      %37 = vector.shape_cast %35 : vector<8x128xf32> to vector<1x8x128xf32>
      %cst_16 = arith.constant dense<0.000000e+00> : vector<8x128xf32>
      %38 = vector.multi_reduction <add>, %37, %cst_16 [0] : vector<1x8x128xf32> to vector<8x128xf32>
      %39 = arith.addf %36, %38 : vector<8x128xf32>
      %c0_17 = arith.constant 0 : index
      %c0_18 = arith.constant 0 : index
      %40 = vector.load %arg6[%c0_17, %c0_18] : memref<8x128xf32, #tpu.memory_space<vmem>>, vector<8x128xf32>
      tpu.vector_store %arg6[%c0_17, %c0_18], %39 {strides = array<i32>} : memref<8x128xf32, #tpu.memory_space<vmem>>, vector<8x128xf32>,
    } else {
    }
    %22 = arith.extui %13 : i1 to i32
    %c0_i32_10 = arith.constant 0 : i32
    %23 = arith.cmpi ne, %22, %c0_i32_10 : i32
    scf.if %23 {
      %c0 = arith.constant 0 : index
      %c0_13 = arith.constant 0 : index
      %27 = vector.load %arg3[%c0, %c0_13] : memref<16x128xbf16, #tpu.memory_space<vmem>>, vector<16x128xbf16>
      %28 = arith.extf %27 : vector<16x128xbf16> to vector<16x128xf32>
      %29 = math.log %28 : vector<16x128xf32>
      %c0_14 = arith.constant 0 : index
      %c0_15 = arith.constant 0 : index
      %30 = vector.load %arg7[%c0_14, %c0_15] : memref<16x128xf32, #tpu.memory_space<vmem>>, vector<16x128xf32>
      %31 = vector.shape_cast %29 : vector<16x128xf32> to vector<1x16x128xf32>
      %cst = arith.constant dense<0.000000e+00> : vector<16x128xf32>
      %32 = vector.multi_reduction <add>, %31, %cst [0] : vector<1x16x128xf32> to vector<16x128xf32>
      %33 = arith.addf %30, %32 : vector<16x128xf32>
      %c0_16 = arith.constant 0 : index
      %c0_17 = arith.constant 0 : index
      %34 = vector.load %arg7[%c0_16, %c0_17] : memref<16x128xf32, #tpu.memory_space<vmem>>, vector<16x128xf32>
      tpu.vector_store %arg7[%c0_16, %c0_17], %33 {strides = array<i32>} : memref<16x128xf32, #tpu.memory_space<vmem>>, vector<16x128xf32>,
    } else {
    }
    %c1_i32_11 = arith.constant 1 : i32
    %24 = arith.cmpi eq, %arg1, %c1_i32_11 : i32
    %25 = arith.extui %24 : i1 to i32
    %c0_i32_12 = arith.constant 0 : i32
    %26 = arith.cmpi ne, %25, %c0_i32_12 : i32
    scf.if %26 {
      %c0 = arith.constant 0 : index
      %c0_13 = arith.constant 0 : index
      %27 = vector.load %arg6[%c0, %c0_13] : memref<8x128xf32, #tpu.memory_space<vmem>>, vector<8x128xf32>
      %28 = vector.shape_cast %27 : vector<8x128xf32> to vector<1x8x128xf32>
      %c0_14 = arith.constant 0 : index
      %c0_15 = arith.constant 0 : index
      %c0_16 = arith.constant 0 : index
      %29 = vector.load %arg4[%c0_14, %c0_15, %c0_16] : memref<1x8x128xf32, #tpu.memory_space<vmem>>, vector<1x8x128xf32>
      tpu.vector_store %arg4[%c0_14, %c0_15, %c0_16], %28 {strides = array<i32>} : memref<1x8x128xf32, #tpu.memory_space<vmem>>, vector<1x8x128xf32>,
      %c0_17 = arith.constant 0 : index
      %c0_18 = arith.constant 0 : index
      %30 = vector.load %arg7[%c0_17, %c0_18] : memref<16x128xf32, #tpu.memory_space<vmem>>, vector<16x128xf32>
      %31 = vector.shape_cast %30 : vector<16x128xf32> to vector<1x16x128xf32>
      %c0_19 = arith.constant 0 : index
      %c0_20 = arith.constant 0 : index
      %c0_21 = arith.constant 0 : index
      %32 = vector.load %arg5[%c0_19, %c0_20, %c0_21] : memref<1x16x128xf32, #tpu.memory_space<vmem>>, vector<1x16x128xf32>
      tpu.vector_store %arg5[%c0_19, %c0_20, %c0_21], %31 {strides = array<i32>} : memref<1x16x128xf32, #tpu.memory_space<vmem>>, vector<1x16x128xf32>,
    } else {
    }
    return
  }
  func.func @transform_0(%arg0: i32, %arg1: i32) -> (i32, i32) {
    %c0_i32 = arith.constant 0 : i32
    %0 = arith.minsi %arg1, %c0_i32 : i32
    %c1_i32 = arith.constant 1 : i32
    %1 = arith.muli %arg0, %c1_i32 : i32
    %2 = arith.addi %1, %0 : i32
    %c1_i32_0 = arith.constant 1 : i32
    %3 = arith.minsi %2, %c1_i32_0 : i32
    %c0_i32_1 = arith.constant 0 : i32
    %c0_i32_2 = arith.constant 0 : i32
    return %3, %c0_i32_1 : i32, i32
  }
  func.func @transform_1(%arg0: i32, %arg1: i32) -> (i32, i32) {
    %c1_i32 = arith.constant 1 : i32
    %0 = arith.subi %arg1, %c1_i32 : i32
    %c0_i32 = arith.constant 0 : i32
    %1 = arith.maxsi %0, %c0_i32 : i32
    %c1_i32_0 = arith.constant 1 : i32
    %2 = arith.muli %arg0, %c1_i32_0 : i32
    %3 = arith.addi %2, %1 : i32
    %c0_i32_1 = arith.constant 0 : i32
    %4 = arith.minsi %3, %c0_i32_1 : i32
    %c0_i32_2 = arith.constant 0 : i32
    %c0_i32_3 = arith.constant 0 : i32
    return %4, %c0_i32_2 : i32, i32
  }
  func.func @transform_2(%arg0: i32, %arg1: i32) -> (i32, i32, i32) {
    %c0_i32 = arith.constant 0 : i32
    %c0_i32_0 = arith.constant 0 : i32
    %c0_i32_1 = arith.constant 0 : i32
    return %arg0, %c0_i32, %c0_i32_0 : i32, i32, i32
  }
  func.func @transform_3(%arg0: i32, %arg1: i32) -> (i32, i32, i32) {
    %c0_i32 = arith.constant 0 : i32
    %c0_i32_0 = arith.constant 0 : i32
    %c0_i32_1 = arith.constant 0 : i32
    return %arg0, %c0_i32, %c0_i32_0 : i32, i32, i32
  }
}

</mosaic_0001>

<llo_original>
// kernel: tpu_custom_call.1
$region0: #{tpu_custom_call.1}
  #allocation0 [shape = 'u32[]', space=smem, size = 0x4, offset = 0x4, fixed_abs, tag = 'smem constant byte address 0x4 - core index']
  #allocation1 [shape = 'u32[144,128]{1,0:T(1,128)}', space=vmem, size = 0x12000, scoped, tag = 'internal scratch']
  #allocation2 [shape = 'f32[8,128]{1,0:T(8,128)}', space=vmem, size = 0x1000, scoped, tag = 'scratch operand']
  #allocation3 [shape = 'f32[16,128]{1,0:T(8,128)}', space=vmem, size = 0x2000, scoped, tag = 'scratch operand']
  %s0 = inlined_call_operand.hbm [shape: f32[9,128], index: 0, kind: input, shape index: {}]
  %s1 = inlined_call_operand.hbm [shape: bf16[16,128], index: 1, kind: input, shape index: {}]
  %s2 = inlined_call_operand.hbm [shape: f32[2,8,128], index: 2, kind: output, shape index: {0}]
  %s3 = inlined_call_operand.hbm [shape: f32[2,16,128], index: 3, kind: output, shape index: {1}]
  %4 = xla_tuple %s2, %s3
  %s5 = sld [smem:[#allocation0]]
  $region77: #{tpu_custom_call.1} parent=0
    _
  %s7 = ssub.s32 1, %s5
  %s8 = scalar_select 0, %s7, %s5
  $region1: #{tpu_custom_call.1} parent=0
    #allocation4 [shape = 'u8[8192]{0}', space=vmem, size = 0x2000, scoped, tag = 'input window, operand 0']
    #allocation5 [shape = 's32[2]{0}', space=sflag, size = 0x8, scoped, tag = 'scoped memory for tpu_custom_call.1']
    #allocation6 [shape = 's32[2]{0}', space=sflag, size = 0x8, scoped, tag = 'scoped memory for tpu_custom_call.1']
    #allocation7 [shape = 'u8[8192]{0}', space=vmem, size = 0x2000, scoped, tag = 'input window, operand 1']
    #allocation8 [shape = 's32[2]{0}', space=sflag, size = 0x8, scoped, tag = 'scoped memory for tpu_custom_call.1']
    #allocation9 [shape = 'u8[8192]{0}', space=vmem, size = 0x2000, scoped, tag = 'output window, operand 0']
    #allocation10 [shape = 'u8[16384]{0}', space=vmem, size = 0x4000, scoped, tag = 'output window, operand 1']
    #allocation11 [shape = 's32[2]{0}', space=sflag, size = 0x8, scoped, tag = 'scoped memory for tpu_custom_call.1']
    %9 = vsyncpa [#allocation5], 0
    %s10 = scalar_lea.sflag [#allocation5], 1
    %11 = vsyncpa %s10, 0
    %12 = vsyncpa [#allocation8], 0
    %s13 = scalar_lea.sflag [#allocation8], 1
    %14 = vsyncpa %s13, 0
    %15 = vsyncpa [#allocation6], 0
    %s16 = scalar_lea.sflag [#allocation6], 1
    %17 = vsyncpa %s16, 0
    %18 = vsyncpa [#allocation11], 0
    %s19 = scalar_lea.sflag [#allocation11], 1
    %20 = vsyncpa %s19, 0
    loop: start=0, step=1, limit=6
    $region2: #{tpu_custom_call.1} parent=1 // loop_pre_header
      _
    $region3: #{tpu_custom_call.1} parent=1 // loop_header
      %s22 = sphi 0, %s26
      %p23 = scmp.ge.s32.totalorder %s22, 6
      %s29 = sphi 0, %s41
      %s30 = sphi 0, %s37
      %s31 = sphi 0, %s29
      %s32 = sphi 0, %s30
      %s33 = sphi 0, %s31
      %s34 = sphi 0, %s32
      %s54 = sphi 0, %s56
      %s57 = sphi 0, %s54
      %s58 = sphi 0, %s57
      %s74 = sphi 0, %s58
      %s92 = sphi 0, %s94
      %s95 = sphi 0, %s92
      %s96 = sphi 0, %s95
      %s112 = sphi 0, %s96
      %s118 = sphi 0, %s120
      %s121 = sphi 0, %s118
      %s122 = sphi 0, %s121
      %s138 = sphi 0, %s122
      %s144 = sphi 0, %s146
      %s147 = sphi 0, %s144
      %s148 = sphi 0, %s147
      %s164 = sphi 0, %s148
    $region4: #{tpu_custom_call.1} parent=1 // loop_header_branch
      %25 = sbr.rel (%p23) target = $region8
    $region5: #{tpu_custom_call.1} parent=1 // loop_body
      %s27 = ssub.s32 %s22, 1
      %s28 = ssub.s32 %s22, 2
      %s35 = sadd.s32 1, %s30
      %p36 = scmp.ge.s32.totalorder %s35, 2
      %s37 = scalar_select %p36, 0, %s35
      %s38 = sadd.s32 1, %s29
      %s39 = scalar_select %p36, %s38, %s29
      %p40 = scmp.ge.s32.totalorder %s39, 2
      %s41 = scalar_select %p40, 0, %s39
      %p42 = scmp.lt.s32.totalorder %s30, 0
      %s43 = scalar_select %p42, %s30, 0
      %s44 = sadd.s32 %s29, %s43
      %p45 = scmp.lt.s32.totalorder %s44, 1
      %s46 = scalar_select %p45, %s44, 1
      %p47 = scmp.lt.s32.totalorder %s37, 0
      %s48 = scalar_select %p47, %s37, 0
      %s49 = sadd.s32 %s41, %s48
      %p50 = scmp.lt.s32.totalorder %s49, 1
      %s51 = scalar_select %p50, %s49, 1
      %s52 = ssub.s32 %s46, %s51
      %p53 = scmp.eq.s32.totalorder %s52, 0
      %s55 = sadd.s32 %s54, 1
      %s56 = scalar_select %p53, %s54, %s55
      %p59 = pneg %p53
      %p60 = scmp.eq.s32.totalorder %s22, 3
      %p61 = por %p59, %p60
      %p62 = scmp.ne.s32.totalorder %s54, %s57
      %p63 = scmp.eq.s32.totalorder %s22, 0
      %p64 = por %p62, %p63
      %p65 = scmp.ne.s32.totalorder %s54, %s57
      %p66 = scmp.eq.s32.totalorder %s27, 3
      %p67 = por %p65, %p66
      %p68 = scmp.ne.s32.totalorder %s57, %s58
      %p69 = scmp.eq.s32.totalorder %s27, 0
      %p70 = por %p68, %p69
      %p71 = scmp.ne.s32.totalorder %s57, %s58
      %p72 = scmp.eq.s32.totalorder %s28, 3
      %p73 = por %p71, %p72
      %p75 = scmp.ne.s32.totalorder %s58, %s74
      %p76 = scmp.eq.s32.totalorder %s28, 0
      %p77 = por %p75, %p76
      %s78 = ssub.s32 %s30, 1
      %p79 = scmp.gt.s32.totalorder %s78, 0
      %s80 = scalar_select %p79, %s78, 0
      %s81 = sadd.s32 %s29, %s80
      %p82 = scmp.lt.s32.totalorder %s81, 0
      %s83 = scalar_select %p82, %s81, 0
      %s84 = ssub.s32 %s37, 1
      %p85 = scmp.gt.s32.totalorder %s84, 0
      %s86 = scalar_select %p85, %s84, 0
      %s87 = sadd.s32 %s41, %s86
      %p88 = scmp.lt.s32.totalorder %s87, 0
      %s89 = scalar_select %p88, %s87, 0
      %s90 = ssub.s32 %s83, %s89
      %p91 = scmp.eq.s32.totalorder %s90, 0
      %s93 = sadd.s32 %s92, 1
      %s94 = scalar_select %p91, %s92, %s93
      %p97 = pneg %p91
      %p98 = scmp.eq.s32.totalorder %s22, 3
      %p99 = por %p97, %p98
      %p100 = scmp.ne.s32.totalorder %s92, %s95
      %p101 = scmp.eq.s32.totalorder %s22, 0
      %p102 = por %p100, %p101
      %p103 = scmp.ne.s32.totalorder %s92, %s95
      %p104 = scmp.eq.s32.totalorder %s27, 3
      %p105 = por %p103, %p104
      %p106 = scmp.ne.s32.totalorder %s95, %s96
      %p107 = scmp.eq.s32.totalorder %s27, 0
      %p108 = por %p106, %p107
      %p109 = scmp.ne.s32.totalorder %s95, %s96
      %p110 = scmp.eq.s32.totalorder %s28, 3
      %p111 = por %p109, %p110
      %p113 = scmp.ne.s32.totalorder %s96, %s112
      %p114 = scmp.eq.s32.totalorder %s28, 0
      %p115 = por %p113, %p114
      %s116 = ssub.s32 %s29, %s41
      %p117 = scmp.eq.s32.totalorder %s116, 0
      %s119 = sadd.s32 %s118, 1
      %s120 = scalar_select %p117, %s118, %s119
      %p123 = pneg %p117
      %p124 = scmp.eq.s32.totalorder %s22, 3
      %p125 = por %p123, %p124
      %p126 = scmp.ne.s32.totalorder %s118, %s121
      %p127 = scmp.eq.s32.totalorder %s22, 0
      %p128 = por %p126, %p127
      %p129 = scmp.ne.s32.totalorder %s118, %s121
      %p130 = scmp.eq.s32.totalorder %s27, 3
      %p131 = por %p129, %p130
      %p132 = scmp.ne.s32.totalorder %s121, %s122
      %p133 = scmp.eq.s32.totalorder %s27, 0
      %p134 = por %p132, %p133
      %p135 = scmp.ne.s32.totalorder %s121, %s122
      %p136 = scmp.eq.s32.totalorder %s28, 3
      %p137 = por %p135, %p136
      %p139 = scmp.ne.s32.totalorder %s122, %s138
      %p140 = scmp.eq.s32.totalorder %s28, 0
      %p141 = por %p139, %p140
      %s142 = ssub.s32 %s29, %s41
      %p143 = scmp.eq.s32.totalorder %s142, 0
      %s145 = sadd.s32 %s144, 1
      %s146 = scalar_select %p143, %s144, %s145
      %p149 = pneg %p143
      %p150 = scmp.eq.s32.totalorder %s22, 3
      %p151 = por %p149, %p150
      %p152 = scmp.ne.s32.totalorder %s144, %s147
      %p153 = scmp.eq.s32.totalorder %s22, 0
      %p154 = por %p152, %p153
      %p155 = scmp.ne.s32.totalorder %s144, %s147
      %p156 = scmp.eq.s32.totalorder %s27, 3
      %p157 = por %p155, %p156
      %p158 = scmp.ne.s32.totalorder %s147, %s148
      %p159 = scmp.eq.s32.totalorder %s27, 0
      %p160 = por %p158, %p159
      %p161 = scmp.ne.s32.totalorder %s147, %s148
      %p162 = scmp.eq.s32.totalorder %s28, 3
      %p163 = por %p161, %p162
      %p165 = scmp.ne.s32.totalorder %s148, %s164
      %p166 = scmp.eq.s32.totalorder %s28, 0
      %p167 = por %p165, %p166
      %p168 = scmp.le.s32.totalorder 1, %s22
      %p169 = scmp.lt.s32.totalorder %s22, 5
      %p170 = pnand %p168, %p169
      %p171 = pneg %p170
      // Predicated region
      $region9: #{tpu_custom_call.1} parent=5 // pred_check
        _
      $region10: #{tpu_custom_call.1} parent=5 // pred_check_branch
        %173 = sbr.rel (%p170) target = $region12
      $region11: #{tpu_custom_call.1} parent=5 // pred_region
        %s174 = ssub.s32 %s22, 1
      $region12: #{tpu_custom_call.1} parent=5 // pred_fallthru
        _
      %p175 = scmp.lt.s32.totalorder %s22, 4
      // Predicated region
      $region13: #{tpu_custom_call.1} parent=5 // pred_check
        %p176 = pneg %p175
      $region14: #{tpu_custom_call.1} parent=5 // pred_check_branch
        %178 = sbr.rel (%p176) target = $region16
      $region15: #{tpu_custom_call.1} parent=5 // pred_region
        // Predicated region
        $region17: #{tpu_custom_call.1} parent=15 // pred_check
          %p179 = pneg %p64
        $region18: #{tpu_custom_call.1} parent=15 // pred_check_branch
          %181 = sbr.rel (%p179) target = $region20
        $region19: #{tpu_custom_call.1} parent=15 // pred_region
          %s182 = sand.u32 %s54, 1
          %s183 = scalar_lea.sflag [#allocation5], %s182
          %s184 = sand.u32 %s54, 1
          %s185 = smul.addr %s184, 8
          %s186 = scalar_lea.vmem [#allocation4], %s185
          %p187 = scmp.lt.s32.totalorder %s30, 0
          %s188 = scalar_select %p187, %s30, 0
          %s189 = sadd.s32 %s29, %s188
          %p190 = scmp.lt.s32.totalorder %s189, 1
          %s191 = scalar_select %p190, %s189, 1
          %s193 = ssub.s32 128, 128
          %194 = vsyncadd %s183, %s193
          %s195 = smul.addr %s191, 128
          %s196 = scalar_lea.hbm %s0, %s195
          %s198 = sshll.u32 %s186, 4
          %s199 = int_to_ptr.vmem [resolvable:$true] %s198
          %201 = dma.hbm_to_vmem [thread:$0]  %s196, 128, %s199, %s183
        $region20: #{tpu_custom_call.1} parent=15 // pred_fallthru
          _
        // Predicated region
        $region21: #{tpu_custom_call.1} parent=15 // pred_check
          %p202 = pneg %p102
        $region22: #{tpu_custom_call.1} parent=15 // pred_check_branch
          %204 = sbr.rel (%p202) target = $region24
        $region23: #{tpu_custom_call.1} parent=15 // pred_region
          %s205 = sand.u32 %s92, 1
          %s206 = scalar_lea.sflag [#allocation8], %s205
          %s207 = sand.u32 %s92, 1
          %s208 = smul.addr %s207, 8
          %s209 = scalar_lea.vmem [#allocation7], %s208
          %s210 = ssub.s32 %s30, 1
          %p211 = scmp.gt.s32.totalorder %s210, 0
          %s212 = scalar_select %p211, %s210, 0
          %s213 = sadd.s32 %s29, %s212
          %p214 = scmp.lt.s32.totalorder %s213, 0
          %s215 = scalar_select %p214, %s213, 0
          %s216 = smul.u32 2, %s215
          %s218 = ssub.s32 128, 128
          %219 = vsyncadd %s206, %s218
          %s220 = smul.addr %s216, 64
          %s221 = scalar_lea.hbm %s1, %s220
          %s222 = sshll.u32 %s209, 4
          %s223 = int_to_ptr.vmem [resolvable:$true] %s222
          %228 = dma.hbm_to_vmem [thread:$0]  %s221, 128, %s223, %s206, 64, 64, 4
        $region24: #{tpu_custom_call.1} parent=15 // pred_fallthru
          _
      $region16: #{tpu_custom_call.1} parent=5 // pred_fallthru
        _
      %p229 = scmp.le.s32.totalorder 1, %s22
      %p230 = scmp.lt.s32.totalorder %s22, 5
      %p231 = pnand %p229, %p230
      %p232 = pneg %p231
      // Predicated region
      $region25: #{tpu_custom_call.1} parent=5 // pred_check
        _
      $region26: #{tpu_custom_call.1} parent=5 // pred_check_branch
        %234 = sbr.rel (%p231) target = $region28
      $region27: #{tpu_custom_call.1} parent=5 // pred_region
        %s235 = ssub.s32 %s22, 1
        %s236 = sand.u32 %s57, 1
        %s237 = scalar_lea.sflag [#allocation5], %s236
        %s238 = sand.u32 %s57, 1
        %s239 = smul.addr %s238, 8
        %s240 = scalar_lea.vmem [#allocation4], %s239
        // Predicated region
        $region29: #{tpu_custom_call.1} parent=27 // pred_check
          %p241 = pneg %p70
        $region30: #{tpu_custom_call.1} parent=27 // pred_check_branch
          %243 = sbr.rel (%p241) target = $region32
        $region31: #{tpu_custom_call.1} parent=27 // pred_region
          %244 = dma.done %s237, 128
        $region32: #{tpu_custom_call.1} parent=27 // pred_fallthru
          _
        %s245 = sand.u32 %s95, 1
        %s246 = scalar_lea.sflag [#allocation8], %s245
        %s247 = sand.u32 %s95, 1
        %s248 = smul.addr %s247, 8
        %s249 = scalar_lea.vmem [#allocation7], %s248
        // Predicated region
        $region33: #{tpu_custom_call.1} parent=27 // pred_check
          %p250 = pneg %p108
        $region34: #{tpu_custom_call.1} parent=27 // pred_check_branch
          %252 = sbr.rel (%p250) target = $region36
        $region35: #{tpu_custom_call.1} parent=27 // pred_region
          %253 = dma.done %s246, 128
        $region36: #{tpu_custom_call.1} parent=27 // pred_fallthru
          _
        %s254 = sand.u32 %s57, 1
        %s255 = scalar_lea.sflag [#allocation5], %s254
        %s256 = sand.u32 %s57, 1
        %s257 = smul.addr %s256, 8
        %s258 = scalar_lea.vmem [#allocation4], %s257
        %p259 = pneg %p70
        %p260 = pneg %p67
        %s261 = sand.u32 %s95, 1
        %s262 = scalar_lea.sflag [#allocation8], %s261
        %s263 = sand.u32 %s95, 1
        %s264 = smul.addr %s263, 8
        %s265 = scalar_lea.vmem [#allocation7], %s264
        %p266 = pneg %p108
        %p267 = pneg %p105
        %p268 = pneg %p134
        %p269 = pneg %p131
        %s270 = sand.u32 %s121, 1
        %s271 = scalar_lea.sflag [#allocation6], %s270
        %s272 = sand.u32 %s121, 1
        %s273 = smul.addr %s272, 8
        %s274 = scalar_lea.vmem [#allocation9], %s273
        %p275 = pneg %p160
        %p276 = pneg %p157
        %s277 = sand.u32 %s147, 1
        %s278 = scalar_lea.sflag [#allocation11], %s277
        %s279 = sand.u32 %s147, 1
        %s280 = smul.addr %s279, 16
        %s281 = scalar_lea.vmem [#allocation10], %s280
        %p282 = scmp.lt.s32.totalorder %s32, 0
        %s283 = scalar_select %p282, %s32, 0
        %s284 = sadd.s32 %s31, %s283
        %p285 = scmp.lt.s32.totalorder %s284, 1
        %s286 = scalar_select %p285, %s284, 1
        %s287 = ssub.s32 %s32, 1
        %p288 = scmp.gt.s32.totalorder %s287, 0
        %s289 = scalar_select %p288, %s287, 0
        %s290 = sadd.s32 %s31, %s289
        %p291 = scmp.lt.s32.totalorder %s290, 0
        %s292 = scalar_select %p291, %s290, 0
        %s293 = smul.u32 2, %s292
        %p294 = scmp.eq.s32.totalorder %s32, 0
        // Predicated region
        $region37: #{tpu_custom_call.1} parent=27 // pred_check
          %p295 = pneg %p294
        $region38: #{tpu_custom_call.1} parent=27 // pred_check_branch
          %297 = sbr.rel (%p295) target = $region40
        $region39: #{tpu_custom_call.1} parent=27 // pred_region
          %298 = vst [vmem:[#allocation2] sm:$0xff] 0.0
          %299 = vst [vmem:[#allocation3] sm:$0xff] 0.0
          %300 = vst [vmem:[#allocation3 + $0x8] sm:$0xff] 0.0
        $region40: #{tpu_custom_call.1} parent=27 // pred_fallthru
          _
        %s301 = sadd.s32 %s31, %s32
        %s302 = ssub.s32 %s32, 1
        %s303 = sadd.s32 %s31, %s302
        %p304 = scmp.lt.s32.totalorder %s32, 1
        %p305 = scmp.lt.s32.totalorder %s301, 2
        %p306 = pnand %p304, %p305
        %p307 = pneg %p306
        %p308 = scmp.ge.s32.totalorder %s32, 1
        %p309 = scmp.lt.s32.totalorder %s303, 1
        %p310 = pnand %p308, %p309
        %p311 = pneg %p310
        %p312 = scmp.lt.s32.totalorder %s301, 1
        %p313 = pnand %p307, %p312
        %p314 = pneg %p313
        // Predicated region
        $region41: #{tpu_custom_call.1} parent=27 // pred_check
          _
        $region42: #{tpu_custom_call.1} parent=27 // pred_check_branch
          %316 = sbr.rel (%p313) target = $region44
        $region43: #{tpu_custom_call.1} parent=27 // pred_region
          %v317 = vld [vmem:[%s240] sm:$0xff]
          %v318 = vlog2.pop %v317
          %v319 = vmul.f32 %v318, 0.6931472
          %v320 = vld [vmem:[#allocation2] sm:$0xff]
          %v321 = vadd.f32 %v319, 0.0
          %v322 = vadd.f32 %v320, %v321
          %323 = vst [vmem:[#allocation2] sm:$0xff] %v322
        $region44: #{tpu_custom_call.1} parent=27 // pred_fallthru
          _
        %p324 = scmp.eq.s32.totalorder %s301, 1
        %p325 = pnand %p307, %p324
        %p326 = pneg %p325
        // Predicated region
        $region45: #{tpu_custom_call.1} parent=27 // pred_check
          _
        $region46: #{tpu_custom_call.1} parent=27 // pred_check_branch
          %328 = sbr.rel (%p325) target = $region48
        $region47: #{tpu_custom_call.1} parent=27 // pred_region
          %v329 = vld [vmem:[%s240] sm:$0xff]
          %v330 = vlog2.pop %v329
          %v331 = vmul.f32 %v330, 0.6931472
          %v332 = vlaneseq
          %v333 = vshrl.u32 %v332, 7
          %v334 = vadd.s32 %v333, 8
          %vm335 = vcmp.lt.s32.totalorder %v334, 9
          %v336 = vsel %vm335, %v331, 0.0
          %v337 = vld [vmem:[#allocation2] sm:$0xff]
          %v338 = vadd.f32 %v336, 0.0
          %v339 = vadd.f32 %v337, %v338
          %340 = vst [vmem:[#allocation2] sm:$0xff] %v339
        $region48: #{tpu_custom_call.1} parent=27 // pred_fallthru
          _
        // Predicated region
        $region49: #{tpu_custom_call.1} parent=27 // pred_check
          _
        $region50: #{tpu_custom_call.1} parent=27 // pred_check_branch
          %342 = sbr.rel (%p310) target = $region52
        $region51: #{tpu_custom_call.1} parent=27 // pred_region
          %v343 = vld [vmem:[%s249] sm:$0xf]
          %v344 = vld [vmem:[%s249 + $0x4] sm:$0xf]
          %v345 = vunpack.c.l.bf16 %v343
          %v346 = vunpack.c.l.bf16 %v344
          %v347 = vlog2.pop %v345
          %v348 = vmul.f32 %v347, 0.6931472
          %v349 = vlog2.pop %v346
          %v350 = vmul.f32 %v349, 0.6931472
          %v351 = vld [vmem:[#allocation3] sm:$0xff]
          %v352 = vld [vmem:[#allocation3 + $0x8] sm:$0xff]
          %v353 = vadd.f32 %v348, 0.0
          %v354 = vadd.f32 %v350, 0.0
          %v355 = vadd.f32 %v351, %v353
          %v356 = vadd.f32 %v352, %v354
          %357 = vst [vmem:[#allocation3] sm:$0xff] %v355
          %358 = vst [vmem:[#allocation3 + $0x8] sm:$0xff] %v356
        $region52: #{tpu_custom_call.1} parent=27 // pred_fallthru
          _
        %p359 = scmp.eq.s32.totalorder %s32, 1
        // Predicated region
        $region53: #{tpu_custom_call.1} parent=27 // pred_check
          %p360 = pneg %p359
        $region54: #{tpu_custom_call.1} parent=27 // pred_check_branch
          %362 = sbr.rel (%p360) target = $region56
        $region55: #{tpu_custom_call.1} parent=27 // pred_region
          %v363 = vld [vmem:[#allocation2] sm:$0xff]
          %364 = vst [vmem:[%s274] sm:$0xff] %v363
          %v365 = vld [vmem:[#allocation3] sm:$0xff]
          %v366 = vld [vmem:[#allocation3 + $0x8] sm:$0xff]
          %367 = vst [vmem:[%s281] sm:$0xff] %v365
          %368 = vst [vmem:[%s281 + $0x8] sm:$0xff] %v366
        $region56: #{tpu_custom_call.1} parent=27 // pred_fallthru
          _
        %s369 = sand.u32 %s121, 1
        %s370 = scalar_lea.sflag [#allocation6], %s369
        %s371 = sand.u32 %s121, 1
        %s372 = smul.addr %s371, 8
        %s373 = scalar_lea.vmem [#allocation9], %s372
        %s374 = sand.u32 %s147, 1
        %s375 = scalar_lea.sflag [#allocation11], %s374
        %s376 = sand.u32 %s147, 1
        %s377 = smul.addr %s376, 16
        %s378 = scalar_lea.vmem [#allocation10], %s377
        // Predicated region
        $region57: #{tpu_custom_call.1} parent=27 // pred_check
          %p379 = pneg %p131
        $region58: #{tpu_custom_call.1} parent=27 // pred_check_branch
          %381 = sbr.rel (%p379) target = $region60
        $region59: #{tpu_custom_call.1} parent=27 // pred_region
          %s383 = ssub.s32 128, 128
          %384 = vsyncadd %s370, %s383
          %s385 = smul.addr %s31, 128
          %s386 = scalar_lea.hbm %s2, %s385
          %s388 = sshll.u32 %s373, 4
          %s389 = int_to_ptr.vmem [resolvable:$true] %s388
          %391 = dma.vmem_to_hbm [thread:$0]  %s389, 128, %s386, %s370
        $region60: #{tpu_custom_call.1} parent=27 // pred_fallthru
          _
        // Predicated region
        $region61: #{tpu_custom_call.1} parent=27 // pred_check
          %p392 = pneg %p157
        $region62: #{tpu_custom_call.1} parent=27 // pred_check_branch
          %394 = sbr.rel (%p392) target = $region64
        $region63: #{tpu_custom_call.1} parent=27 // pred_region
          %s396 = ssub.s32 256, 256
          %397 = vsyncadd %s375, %s396
          %s398 = smul.addr %s31, 2
          %s399 = smul.addr %s398, 128
          %s400 = scalar_lea.hbm %s3, %s399
          %s401 = sshll.u32 %s378, 4
          %s402 = int_to_ptr.vmem [resolvable:$true] %s401
          %407 = dma.vmem_to_hbm [thread:$0]  %s402, 256, %s400, %s375, 128, 128, 8
        $region64: #{tpu_custom_call.1} parent=27 // pred_fallthru
          _
      $region28: #{tpu_custom_call.1} parent=5 // pred_fallthru
        _
      %p408 = scmp.le.s32.totalorder 2, %s22
      // Predicated region
      $region65: #{tpu_custom_call.1} parent=5 // pred_check
        %p409 = pneg %p408
      $region66: #{tpu_custom_call.1} parent=5 // pred_check_branch
        %411 = sbr.rel (%p409) target = $region68
      $region67: #{tpu_custom_call.1} parent=5 // pred_region
        %s412 = ssub.s32 %s22, 2
        // Predicated region
        $region69: #{tpu_custom_call.1} parent=67 // pred_check
          %p413 = pneg %p137
        $region70: #{tpu_custom_call.1} parent=67 // pred_check_branch
          %415 = sbr.rel (%p413) target = $region72
        $region71: #{tpu_custom_call.1} parent=67 // pred_region
          %s416 = sand.u32 %s122, 1
          %s417 = scalar_lea.sflag [#allocation6], %s416
          %s418 = sand.u32 %s122, 1
          %s419 = smul.addr %s418, 8
          %s420 = scalar_lea.vmem [#allocation9], %s419
          %421 = dma.done %s417, 128
        $region72: #{tpu_custom_call.1} parent=67 // pred_fallthru
          _
        // Predicated region
        $region73: #{tpu_custom_call.1} parent=67 // pred_check
          %p422 = pneg %p163
        $region74: #{tpu_custom_call.1} parent=67 // pred_check_branch
          %424 = sbr.rel (%p422) target = $region76
        $region75: #{tpu_custom_call.1} parent=67 // pred_region
          %s425 = sand.u32 %s148, 1
          %s426 = scalar_lea.sflag [#allocation11], %s425
          %s427 = sand.u32 %s148, 1
          %s428 = smul.addr %s427, 16
          %s429 = scalar_lea.vmem [#allocation10], %s428
          %430 = dma.done %s426, 256
        $region76: #{tpu_custom_call.1} parent=67 // pred_fallthru
          _
      $region68: #{tpu_custom_call.1} parent=5 // pred_fallthru
        _
    $region6: #{tpu_custom_call.1} parent=1 // loop_footer
      %s26 = sadd.s32 1, %s22
    $region7: #{tpu_custom_call.1} parent=1 // loop_footer_branch
      %21 = sbr.rel target = $region3
    $region8: #{tpu_custom_call.1} parent=1 // loop_exit
      _
    %431 = vsyncpa [#allocation5], 1
    %s432 = scalar_lea.sflag [#allocation5], 1
    %433 = vsyncpa %s432, 1
    %434 = vsyncpa [#allocation8], 1
    %s435 = scalar_lea.sflag [#allocation8], 1
    %436 = vsyncpa %s435, 1
    %437 = vsyncpa [#allocation6], 1
    %s438 = scalar_lea.sflag [#allocation6], 1
    %439 = vsyncpa %s438, 1
    %440 = vsyncpa [#allocation11], 1
    %s441 = scalar_lea.sflag [#allocation11], 1
    %442 = vsyncpa %s441, 1

</llo_original>
